<compile_context>
chip_gen: v5e
topology: v5e:2x2
jax: 0.10.0
libtpu: 0.0.40
codegen_flags: <defaults>
</compile_context>

<pallas_src>
import numpy as np
import jax
import jax.numpy as jnp
from jax.experimental import pallas as pl
from jax.experimental.pallas import tpu as pltpu

LANE = 128          # last-dim vreg width
SUBLANE_BF16 = 16   # second-to-last-dim tile for bf16


def _round_up(x, m):
    return (x + m - 1) // m * m


def _const_spec(shape):
    """BlockSpec for an operand whose block never changes across the grid.

    Constant index_map => DMA'd once; Buffered(1) => single VMEM buffer
    (default double-buffering would waste half the weight VMEM for nothing).
    """
    idx = lambda *_: (0,) * len(shape)
    try:
        return pl.BlockSpec(shape, idx, pipeline_mode=pl.Buffered(1))
    except TypeError:  # older API without pipeline_mode -- fall back cleanly
        return pl.BlockSpec(shape, idx)


# ----------------------------------------------------------------------------
# Kernels
# ----------------------------------------------------------------------------
def _make_resident_kernel(n_layers):
    """relu(... relu(x@W0+b0) ... @W_{L-1}+b_{L-1}) with all weights VMEM-resident."""

    def kernel(x_ref, *refs):
        o_ref = refs[-1]
        h = x_ref[...]                                        # bf16 activation
        for l in range(n_layers):                             # statically unrolled
            w = refs[2 * l][...]                              # bf16 (Kp, Np)
            b = refs[2 * l + 1][...].astype(jnp.float32)      # (1, Np)
            y = jnp.dot(h, w, preferred_element_type=jnp.float32)   # MXU, f32 acc
            y = jnp.maximum(y + b, 0.0)                       # bias + ReLU on VPU
            h = y.astype(jnp.bfloat16) if l < n_layers - 1 else y   # bf16 between layers
        o_ref[...] = h.astype(o_ref.dtype)

    return kernel


def _streaming_kernel(x_ref, w_ref, b_ref, o_ref, h_ref):
    """Layer-streaming variant: grid = (batch_tiles, layers).

    The running activation lives in a persistent VMEM scratch (h_ref); one
    layer's (padded) weights are streamed per grid step and the DMA of layer
    l+1 hides behind layer l's matmul via the default double-buffering.
    """
    l = pl.program_id(1)

    @pl.when(l == 0)
    def _():
        h_ref[...] = x_ref[...]                               # (re)load input tile

    y = jnp.dot(h_ref[...], w_ref[0], preferred_element_type=jnp.float32)
    y = jnp.maximum(y + b_ref[0].astype(jnp.float32), 0.0)
    h_ref[...] = y.astype(h_ref.dtype)

    @pl.when(l == pl.num_programs(1) - 1)
    def _():
        o_ref[...] = y.astype(o_ref.dtype)


# ----------------------------------------------------------------------------
# Wrapper
# ----------------------------------------------------------------------------
def make_decoder_fn(params, *, force_streaming=False, max_batch_tile=None):
    """Pre-pads / casts the weights ONCE and returns a jitted forward fn.

    params: list of (W, b) with W: (in_features, out_features), b: (out_features,)
            (i.e. PyTorch's (out, in) weight already transposed).
    """
    n_layers = len(params)
    assert n_layers >= 1, "Decoder needs at least one Linear layer"
    in_dim = params[0][0].shape[0]
    out_dim = params[-1][0].shape[1]
    dims = [in_dim] + [w.shape[1] for w, _ in params]
    pdims = [_round_up(d, LANE) for d in dims]

    # Best-effort chip heuristics (never fatal).
    try:
        kind = jax.devices()[0].device_kind.lower()
    except Exception:  # pragma: no cover
        kind = ""
    is_v5 = "v5" in kind
    is_multi_tc = ("v7" in kind) or ("tpu7" in kind)          # 2 TensorCores / chip

    tb_cap = max_batch_tile if max_batch_tile is not None else (128 if is_v5 else 256)
    tb_cap = max(_round_up(tb_cap, SUBLANE_BF16), SUBLANE_BF16)

    # Resident bf16 footprint (single-buffered weights + biases).
    resident_w_bytes = sum(pdims[l] * pdims[l + 1] * 2 + pdims[l + 1] * 2
                           for l in range(n_layers))
    budget = (24 << 20) if is_v5 else (40 << 20)
    streaming = force_streaming or resident_w_bytes > budget

    # ---- one-time weight padding / transpose-free layout / bf16 cast -------
    if not streaming:
        ws = tuple(
            jnp.zeros((pdims[l], pdims[l + 1]), jnp.bfloat16)
            .at[: dims[l], : dims[l + 1]].set(w.astype(jnp.bfloat16))
            for l, (w, _) in enumerate(params))
        bs = tuple(
            jnp.zeros((1, pdims[l + 1]), jnp.bfloat16)
            .at[0, : dims[l + 1]].set(b.astype(jnp.bfloat16))
            for l, (_, b) in enumerate(params))
    else:
        # All layers padded to a common (Dmax, Dmax) tile so one BlockSpec
        # streams them.  Zero padding keeps the extra rows/cols exactly 0
        # through the ReLU chain.
        dmax = max(pdims)
        w_stack = jnp.zeros((n_layers, dmax, dmax), jnp.bfloat16)
        b_stack = jnp.zeros((n_layers, 1, dmax), jnp.bfloat16)
        for l, (w, b) in enumerate(params):
            w_stack = w_stack.at[l, : dims[l], : dims[l + 1]].set(w.astype(jnp.bfloat16))
            b_stack = b_stack.at[l, 0, : dims[l + 1]].set(b.astype(jnp.bfloat16))

    def _pick_batch_tiling(B):
        Bp = _round_up(max(B, 1), SUBLANE_BF16)
        TB = min(Bp, tb_cap)
        Bp = _round_up(Bp, TB)
        # v7x: split a single-step grid so the "parallel" axis uses both TCs.
        if is_multi_tc and Bp == TB and Bp >= 2 * SUBLANE_BF16:
            TB = _round_up(Bp // 2, SUBLANE_BF16)
            Bp = _round_up(Bp, TB)
        return Bp, TB

    # ---- resident-weights forward ------------------------------------------
    def _resident_fwd(x):
        B = x.shape[0]
        Bp, TB = _pick_batch_tiling(B)
        in_np, out_np = pdims[0], pdims[-1]

        x_p = (jnp.zeros((Bp, in_np), jnp.bfloat16)
               .at[:B, :in_dim].set(x.astype(jnp.bfloat16)))

        in_specs = [pl.BlockSpec((TB, in_np), lambda i: (i, 0))]
        operands = [x_p]
        for l in range(n_layers):
            in_specs.append(_const_spec((pdims[l], pdims[l + 1])))
            in_specs.append(_const_spec((1, pdims[l + 1])))
            operands += [ws[l], bs[l]]

        w_bytes = sum(int(a.size) * 2 for a in ws) + sum(int(a.size) * 2 for a in bs)
        act_bytes = TB * max(pdims) * (4 + 2) * 2              # live f32 y + bf16 h
        io_bytes = 2 * TB * in_np * 2 + 2 * TB * out_np * 4    # double-buffered tiles
        vmem_limit = int(min(max(2 * w_bytes + act_bytes + io_bytes + (4 << 20),
                                 16 << 20), 64 << 20))

        flops = sum(2 * Bp * pdims[l] * pdims[l + 1] for l in range(n_layers))
        bytes_accessed = int(x_p.size) * 2 + w_bytes + Bp * out_np * 4

        out_p = pl.pallas_call(
            _make_resident_kernel(n_layers),
            out_shape=jax.ShapeDtypeStruct((Bp, out_np), jnp.float32),
            grid=(Bp // TB,),
            in_specs=in_specs,
            out_specs=pl.BlockSpec((TB, out_np), lambda i: (i, 0)),
            compiler_params=pltpu.CompilerParams(
                dimension_semantics=("parallel",),
                vmem_limit_bytes=vmem_limit),
            cost_estimate=pl.CostEstimate(
                flops=flops, transcendentals=0, bytes_accessed=bytes_accessed),
        )(*operands)
        return out_p[:B, :out_dim]

    # ---- layer-streaming forward -------------------------------------------
    def _streaming_fwd(x):
        B = x.shape[0]
        Bp, TB = _pick_batch_tiling(B)
        dmax = int(w_stack.shape[1])

        x_p = (jnp.zeros((Bp, dmax), jnp.bfloat16)
               .at[:B, :in_dim].set(x.astype(jnp.bfloat16)))

        vmem_limit = int(min(max(
            2 * (dmax * dmax * 2 + dmax * 2)        # double-buffered W/b blocks
            + 2 * TB * dmax * 2 + 2 * TB * dmax * 4  # in / out tiles
            + TB * dmax * (2 + 4)                    # scratch h + live f32 y
            + (4 << 20), 16 << 20), 64 << 20))

        n_tiles = Bp // TB
        flops = 2 * Bp * dmax * dmax * n_layers
        bytes_accessed = (int(x_p.size) * 2
                          + n_tiles * (int(w_stack.size) + int(b_stack.size)) * 2
                          + Bp * dmax * 4)

        out_p = pl.pallas_call(
            _streaming_kernel,
            out_shape=jax.ShapeDtypeStruct((Bp, dmax), jnp.float32),
            grid=(n_tiles, n_layers),
            in_specs=[
                pl.BlockSpec((TB, dmax), lambda i, l: (i, 0)),
                pl.BlockSpec((1, dmax, dmax), lambda i, l: (l, 0, 0)),
                pl.BlockSpec((1, 1, dmax), lambda i, l: (l, 0, 0)),
            ],
            out_specs=pl.BlockSpec((TB, dmax), lambda i, l: (i, 0)),
            scratch_shapes=[pltpu.VMEM((TB, dmax), jnp.bfloat16)],
            compiler_params=pltpu.CompilerParams(
                dimension_semantics=("parallel", "arbitrary"),
                vmem_limit_bytes=vmem_limit),
            cost_estimate=pl.CostEstimate(
                flops=flops, transcendentals=0, bytes_accessed=bytes_accessed),
        )(x_p, w_stack, b_stack)
        return out_p[:B, :out_dim]

    return jax.jit(_streaming_fwd if streaming else _resident_fwd)


# ----------------------------------------------------------------------------
# Parameter init (mimics nn.Linear default init; W stored as (in, out))
# ----------------------------------------------------------------------------
def make_decoder_params(in_dim, out_dim, layers, key):
    steps = np.linspace(in_dim, out_dim, layers, endpoint=True).astype(int)
    params = []
    for a, b in zip(steps[:-1], steps[1:]):
        key, kw, kb = jax.random.split(key, 3)
        bound = 1.0 / np.sqrt(a)
        w = jax.random.uniform(kw, (int(a), int(b)), jnp.float32, -bound, bound)
        bias = jax.random.uniform(kb, (int(b),), jnp.float32, -bound, bound)
        params.append((w, bias))
    return params


def decoder_forward_ref_bf16(x, params):
    """Pure-JAX reference matching the kernel's bf16-input / f32-accumulate math."""
    h = x.astype(jnp.bfloat16)
    n = len(params)
    for l, (w, b) in enumerate(params):
        y = jnp.dot(h, w.astype(jnp.bfloat16), preferred_element_type=jnp.float32)
        y = jnp.maximum(y + b.astype(jnp.bfloat16).astype(jnp.float32), 0.0)
        h = y.astype(jnp.bfloat16) if l < n - 1 else y
    return h


if __name__ == "__main__":
    in_dim, out_dim, layers = 32, 16, 3   # steps = [32, 24, 16] -> 2 x (Linear+ReLU)

    key = jax.random.PRNGKey(0)
    key, kx1, kx2 = jax.random.split(key, 3)
    params = make_decoder_params(in_dim, out_dim, layers, key)

    x_small = jax.random.normal(kx1, (8, in_dim), dtype=jnp.float32)
    x_big = jax.random.normal(kx2, (48, in_dim), dtype=jnp.float32)

    cases = [
        ("resident", make_decoder_fn(params)),
        ("resident-tiled", make_decoder_fn(params, max_batch_tile=16)),
        ("streaming", make_decoder_fn(params, force_streaming=True)),
    ]

    for name, fwd in cases:
        for x in (x_small, x_big):
            out = jax.block_until_ready(fwd(x))
            assert out.shape == (x.shape[0], out_dim), name
            ref = decoder_forward_ref_bf16(x, params)
            np.testing.assert_allclose(np.asarray(out), np.asarray(ref),
                                       rtol=2e-2, atol=2e-2, err_msg=name)

    print("KERNEL_OK")
</pallas_src>

<mosaic_0001>
module attributes {stable_mosaic.version = 11 : i64} {
  func.func @kernel(%arg0: i32, %arg1: memref<16x128xbf16, #tpu.memory_space<vmem>>, %arg2: memref<128x128xbf16, #tpu.memory_space<vmem>>, %arg3: memref<1x128xbf16, #tpu.memory_space<vmem>>, %arg4: memref<128x128xbf16, #tpu.memory_space<vmem>>, %arg5: memref<1x128xbf16, #tpu.memory_space<vmem>>, %arg6: memref<16x128xf32, #tpu.memory_space<vmem>>) attributes {dimension_semantics = [#tpu.dimension_semantics<parallel>], iteration_bounds = array<i64: 1>, scalar_prefetch = 0 : i64, scratch_operands = 0 : i64, tpu.core_type = #tpu.core_type<tc>, window_params = [{transform_indices = @transform_0, window_bounds = array<i64: 16, 128>}, {pipeline_mode = #tpu.pipeline_mode<synchronous>, transform_indices = @transform_1, window_bounds = array<i64: 128, 128>}, {pipeline_mode = #tpu.pipeline_mode<synchronous>, transform_indices = @transform_2, window_bounds = array<i64: 1, 128>}, {pipeline_mode = #tpu.pipeline_mode<synchronous>, transform_indices = @transform_3, window_bounds = array<i64: 128, 128>}, {pipeline_mode = #tpu.pipeline_mode<synchronous>, transform_indices = @transform_4, window_bounds = array<i64: 1, 128>}, {transform_indices = @transform_5, window_bounds = array<i64: 16, 128>}]} {
    %c0 = arith.constant 0 : index
    %c0_0 = arith.constant 0 : index
    %0 = vector.load %arg1[%c0, %c0_0] : memref<16x128xbf16, #tpu.memory_space<vmem>>, vector<16x128xbf16>
    %c0_1 = arith.constant 0 : index
    %c0_2 = arith.constant 0 : index
    %1 = vector.load %arg2[%c0_1, %c0_2] : memref<128x128xbf16, #tpu.memory_space<vmem>>, vector<128x128xbf16>
    %c0_3 = arith.constant 0 : index
    %c0_4 = arith.constant 0 : index
    %2 = vector.load %arg3[%c0_3, %c0_4] : memref<1x128xbf16, #tpu.memory_space<vmem>>, vector<1x128xbf16>
    %3 = arith.extf %2 : vector<1x128xbf16> to vector<1x128xf32>
    %cst = arith.constant dense<0.000000e+00> : vector<16x128xf32>
    %4 = tpu.matmul %0, %1, %cst {dimension_numbers = #tpu.dot_dimension_numbers<[1], [0], [0], [1], [0, 0, 1, 1], [], []>} : vector<16x128xbf16>, vector<128x128xbf16>, vector<16x128xf32> -> vector<16x128xf32>
    %5 = vector.broadcast %3 : vector<1x128xf32> to vector<16x128xf32>
    %6 = arith.addf %4, %5 : vector<16x128xf32>
    %cst_5 = arith.constant 0.000000e+00 : f32
    %7 = vector.broadcast %cst_5 : f32 to vector<16x128xf32>
    %8 = arith.maximumf %6, %7 : vector<16x128xf32>
    %9 = arith.truncf %8 : vector<16x128xf32> to vector<16x128xbf16>
    %c0_6 = arith.constant 0 : index
    %c0_7 = arith.constant 0 : index
    %10 = vector.load %arg4[%c0_6, %c0_7] : memref<128x128xbf16, #tpu.memory_space<vmem>>, vector<128x128xbf16>
    %c0_8 = arith.constant 0 : index
    %c0_9 = arith.constant 0 : index
    %11 = vector.load %arg5[%c0_8, %c0_9] : memref<1x128xbf16, #tpu.memory_space<vmem>>, vector<1x128xbf16>
    %12 = arith.extf %11 : vector<1x128xbf16> to vector<1x128xf32>
    %cst_10 = arith.constant dense<0.000000e+00> : vector<16x128xf32>
    %13 = tpu.matmul %9, %10, %cst_10 {dimension_numbers = #tpu.dot_dimension_numbers<[1], [0], [0], [1], [0, 0, 1, 1], [], []>} : vector<16x128xbf16>, vector<128x128xbf16>, vector<16x128xf32> -> vector<16x128xf32>
    %14 = vector.broadcast %12 : vector<1x128xf32> to vector<16x128xf32>
    %15 = arith.addf %13, %14 : vector<16x128xf32>
    %cst_11 = arith.constant 0.000000e+00 : f32
    %16 = vector.broadcast %cst_11 : f32 to vector<16x128xf32>
    %17 = arith.maximumf %15, %16 : vector<16x128xf32>
    %c0_12 = arith.constant 0 : index
    %c0_13 = arith.constant 0 : index
    %18 = vector.load %arg6[%c0_12, %c0_13] : memref<16x128xf32, #tpu.memory_space<vmem>>, vector<16x128xf32>
    tpu.vector_store %arg6[%c0_12, %c0_13], %17 {strides = array<i32>} : memref<16x128xf32, #tpu.memory_space<vmem>>, vector<16x128xf32>,
    return
  }
  func.func @transform_0(%arg0: i32) -> (i32, i32) {
    %c0_i32 = arith.constant 0 : i32
    %c0_i32_0 = arith.constant 0 : i32
    return %arg0, %c0_i32 : i32, i32
  }
  func.func @transform_1(%arg0: i32) -> (i32, i32) {
    %c0_i32 = arith.constant 0 : i32
    %c0_i32_0 = arith.constant 0 : i32
    %c0_i32_1 = arith.constant 0 : i32
    return %c0_i32, %c0_i32_0 : i32, i32
  }
  func.func @transform_2(%arg0: i32) -> (i32, i32) {
    %c0_i32 = arith.constant 0 : i32
    %c0_i32_0 = arith.constant 0 : i32
    %c0_i32_1 = arith.constant 0 : i32
    return %c0_i32, %c0_i32_0 : i32, i32
  }
  func.func @transform_3(%arg0: i32) -> (i32, i32) {
    %c0_i32 = arith.constant 0 : i32
    %c0_i32_0 = arith.constant 0 : i32
    %c0_i32_1 = arith.constant 0 : i32
    return %c0_i32, %c0_i32_0 : i32, i32
  }
  func.func @transform_4(%arg0: i32) -> (i32, i32) {
    %c0_i32 = arith.constant 0 : i32
    %c0_i32_0 = arith.constant 0 : i32
    %c0_i32_1 = arith.constant 0 : i32
    return %c0_i32, %c0_i32_0 : i32, i32
  }
  func.func @transform_5(%arg0: i32) -> (i32, i32) {
    %c0_i32 = arith.constant 0 : i32
    %c0_i32_0 = arith.constant 0 : i32
    return %arg0, %c0_i32 : i32, i32
  }
}

</mosaic_0001>

<llo_original>
// kernel: _resident_fwd.1
$region0: #{_resident_fwd.1}
  #allocation0 [shape = 'u32[]', space=smem, size = 0x4, offset = 0x4, fixed_abs, tag = 'smem constant byte address 0x4 - core index']
  #allocation1 [shape = 'u32[72,128]{1,0:T(1,128)}', space=vmem, size = 0x9000, scoped, tag = 'internal scratch']
  %s0 = inlined_call_operand.vmem [shape: bf16[16,128], index: 0, kind: input, shape index: {}]
  %s1 = inlined_call_operand.hbm [shape: bf16[128,128], index: 1, kind: input, shape index: {}]
  %s2 = inlined_call_operand.vmem [shape: bf16[1,128], index: 2, kind: input, shape index: {}]
  %s3 = inlined_call_operand.hbm [shape: bf16[128,128], index: 3, kind: input, shape index: {}]
  %s4 = inlined_call_operand.vmem [shape: bf16[1,128], index: 4, kind: input, shape index: {}]
  %s5 = inlined_call_operand.vmem [shape: f32[16,128], index: 5, kind: output, shape index: {}]
  %s6 = sld [smem:[#allocation0]]
  $region38: #{_resident_fwd.1} parent=0
    _
  %s8 = ssub.s32 1, %s6
  %s9 = scalar_select 0, %s8, %s6
  $region1: #{_resident_fwd.1} parent=0
    #allocation2 [shape = 'u8[32768]{0}', space=vmem, size = 0x8000, scoped, tag = 'input window, operand 1, single buffered']
    #allocation3 [shape = 's32[1]{0}', space=sflag, size = 0x4, scoped, tag = 'scoped memory for _resident_fwd.1']
    #allocation4 [shape = 'u8[32768]{0}', space=vmem, size = 0x8000, scoped, tag = 'input window, operand 3, single buffered']
    #allocation5 [shape = 's32[1]{0}', space=sflag, size = 0x4, scoped, tag = 'scoped memory for _resident_fwd.1']
    %10 = vsyncpa [#allocation3], 0
    %11 = vsyncpa [#allocation5], 0
    // Predicated region
    $region2: #{_resident_fwd.1} parent=1 // pred_check
      _
    $region3: #{_resident_fwd.1} parent=1 // pred_check_branch
      %13 = sbr.rel (0) target = $region5
    $region4: #{_resident_fwd.1} parent=1 // pred_region
      _
    $region5: #{_resident_fwd.1} parent=1 // pred_fallthru
      _
    // Predicated region
    $region6: #{_resident_fwd.1} parent=1 // pred_check
      _
    $region7: #{_resident_fwd.1} parent=1 // pred_check_branch
      %15 = sbr.rel (0) target = $region9
    $region8: #{_resident_fwd.1} parent=1 // pred_region
      %17 = vsyncadd [#allocation3], 0
      %s18 = sshll.u32 %s1, 4
      %s19 = int_to_ptr.hbm [resolvable:$true] %s18
      %s20 = sshll.u32 [#allocation2], 4
      %s21 = int_to_ptr.vmem [resolvable:$true] %s20
      %26 = dma.hbm_to_vmem [thread:$0]  %s19, 1024, %s21, [#allocation3], 64, 64, 4
    $region9: #{_resident_fwd.1} parent=1 // pred_fallthru
      _
    // Predicated region
    $region10: #{_resident_fwd.1} parent=1 // pred_check
      _
    $region11: #{_resident_fwd.1} parent=1 // pred_check_branch
      %28 = sbr.rel (0) target = $region13
    $region12: #{_resident_fwd.1} parent=1 // pred_region
      _
    $region13: #{_resident_fwd.1} parent=1 // pred_fallthru
      _
    // Predicated region
    $region14: #{_resident_fwd.1} parent=1 // pred_check
      _
    $region15: #{_resident_fwd.1} parent=1 // pred_check_branch
      %30 = sbr.rel (0) target = $region17
    $region16: #{_resident_fwd.1} parent=1 // pred_region
      %32 = vsyncadd [#allocation5], 0
      %s33 = sshll.u32 %s3, 4
      %s34 = int_to_ptr.hbm [resolvable:$true] %s33
      %s35 = sshll.u32 [#allocation4], 4
      %s36 = int_to_ptr.vmem [resolvable:$true] %s35
      %41 = dma.hbm_to_vmem [thread:$0]  %s34, 1024, %s36, [#allocation5], 64, 64, 4
    $region17: #{_resident_fwd.1} parent=1 // pred_fallthru
      _
    // Predicated region
    $region18: #{_resident_fwd.1} parent=1 // pred_check
      _
    $region19: #{_resident_fwd.1} parent=1 // pred_check_branch
      %43 = sbr.rel (0) target = $region21
    $region20: #{_resident_fwd.1} parent=1 // pred_region
      _
    $region21: #{_resident_fwd.1} parent=1 // pred_fallthru
      _
    // Predicated region
    $region22: #{_resident_fwd.1} parent=1 // pred_check
      _
    $region23: #{_resident_fwd.1} parent=1 // pred_check_branch
      %45 = sbr.rel (0) target = $region25
    $region24: #{_resident_fwd.1} parent=1 // pred_region
      %47 = dma.done [#allocation3], 1024
    $region25: #{_resident_fwd.1} parent=1 // pred_fallthru
      _
    // Predicated region
    $region26: #{_resident_fwd.1} parent=1 // pred_check
      _
    $region27: #{_resident_fwd.1} parent=1 // pred_check_branch
      %49 = sbr.rel (0) target = $region29
    $region28: #{_resident_fwd.1} parent=1 // pred_region
      %51 = dma.done [#allocation5], 1024
    $region29: #{_resident_fwd.1} parent=1 // pred_fallthru
      _
    %v52 = vld [vmem:[%s0] sm:$0xf]
    %v53 = vld [vmem:[%s0 + $0x4] sm:$0xf]
    %v54 = vld [vmem:[#allocation2] sm:$0xf]
    %v55 = vld [vmem:[#allocation2 + $0x4] sm:$0xf]
    %v56 = vld [vmem:[#allocation2 + $0x8] sm:$0xf]
    %v57 = vld [vmem:[#allocation2 + $0xc] sm:$0xf]
    %v58 = vld [vmem:[#allocation2 + $0x10] sm:$0xf]
    %v59 = vld [vmem:[#allocation2 + $0x14] sm:$0xf]
    %v60 = vld [vmem:[#allocation2 + $0x18] sm:$0xf]
    %v61 = vld [vmem:[#allocation2 + $0x1c] sm:$0xf]
    %v62 = vld [vmem:[#allocation2 + $0x20] sm:$0xf]
    %v63 = vld [vmem:[#allocation2 + $0x24] sm:$0xf]
    %v64 = vld [vmem:[#allocation2 + $0x28] sm:$0xf]
    %v65 = vld [vmem:[#allocation2 + $0x2c] sm:$0xf]
    %v66 = vld [vmem:[#allocation2 + $0x30] sm:$0xf]
    %v67 = vld [vmem:[#allocation2 + $0x34] sm:$0xf]
    %v68 = vld [vmem:[#allocation2 + $0x38] sm:$0xf]
    %v69 = vld [vmem:[#allocation2 + $0x3c] sm:$0xf]
    %v70 = vld [vmem:[%s2] sm:$0x1]
    %v71 = vunpack.c.l.bf16 %v70
    %v72 = vperm.slane %v71, 0
    %v75 = vunpack.c.l.b16 %v52
    %v76 = vunpack.c.l.b16 %v53
    %v77 = vpack.c.b16 %v76, %v75
    %v95 = vunpack.c.l.b16 %v54
    %v96 = vunpack.c.l.b16 %v55
    %v97 = vunpack.c.l.b16 %v56
    %v98 = vunpack.c.l.b16 %v57
    %v99 = vunpack.c.l.b16 %v58
    %v100 = vunpack.c.l.b16 %v59
    %v101 = vunpack.c.l.b16 %v60
    %v102 = vunpack.c.l.b16 %v61
    %v103 = vunpack.c.l.b16 %v62
    %v104 = vunpack.c.l.b16 %v63
    %v105 = vunpack.c.l.b16 %v64
    %v106 = vunpack.c.l.b16 %v65
    %v107 = vunpack.c.l.b16 %v66
    %v108 = vunpack.c.l.b16 %v67
    %v109 = vunpack.c.l.b16 %v68
    %v110 = vunpack.c.l.b16 %v69
    %v111 = vpack.c.b16 %v96, %v95
    %v112 = vpack.c.b16 %v98, %v97
    %v113 = vpack.c.b16 %v100, %v99
    %v114 = vpack.c.b16 %v102, %v101
    %v115 = vpack.c.b16 %v104, %v103
    %v116 = vpack.c.b16 %v106, %v105
    %v117 = vpack.c.b16 %v108, %v107
    %v118 = vpack.c.b16 %v110, %v109
    %127 = vmatpush.bf16.msra.mxu0 %v118
    %128 = vmatpush.bf16.msra.mxu0 %v117
    %129 = vmatpush.bf16.msra.mxu0 %v116
    %130 = vmatpush.bf16.msra.mxu0 %v115
    %131 = vmatpush.bf16.msra.mxu0 %v114
    %132 = vmatpush.bf16.msra.mxu0 %v113
    %133 = vmatpush.bf16.msra.mxu0 %v112
    %134 = vmatpush.bf16.msra.mxu0 %v111
    %135 = vmatmul.bf16.gmra.mxu0 %v77
    %v136 = vpop.f32.mrf.mxu0
    %v137 = vadd.f32 %v72, %v136
    %v138 = vpop.f32.mrf.mxu0
    %v139 = vadd.f32 %v72, %v138
    %140 = vdwg.mxu0
    %v141 = vmax.f32 %v137, 0.0
    %v142 = vmax.f32 %v139, 0.0
    %v143 = vpack.c.bf16 %v142, %v141
    %v144 = vld [vmem:[#allocation4] sm:$0xf]
    %v145 = vld [vmem:[#allocation4 + $0x4] sm:$0xf]
    %v146 = vld [vmem:[#allocation4 + $0x8] sm:$0xf]
    %v147 = vld [vmem:[#allocation4 + $0xc] sm:$0xf]
    %v148 = vld [vmem:[#allocation4 + $0x10] sm:$0xf]
    %v149 = vld [vmem:[#allocation4 + $0x14] sm:$0xf]
    %v150 = vld [vmem:[#allocation4 + $0x18] sm:$0xf]
    %v151 = vld [vmem:[#allocation4 + $0x1c] sm:$0xf]
    %v152 = vld [vmem:[#allocation4 + $0x20] sm:$0xf]
    %v153 = vld [vmem:[#allocation4 + $0x24] sm:$0xf]
    %v154 = vld [vmem:[#allocation4 + $0x28] sm:$0xf]
    %v155 = vld [vmem:[#allocation4 + $0x2c] sm:$0xf]
    %v156 = vld [vmem:[#allocation4 + $0x30] sm:$0xf]
    %v157 = vld [vmem:[#allocation4 + $0x34] sm:$0xf]
    %v158 = vld [vmem:[#allocation4 + $0x38] sm:$0xf]
    %v159 = vld [vmem:[#allocation4 + $0x3c] sm:$0xf]
    %v160 = vld [vmem:[%s4] sm:$0x1]
    %v161 = vunpack.c.l.bf16 %v160
    %v162 = vperm.slane %v161, 0
    %v179 = vunpack.c.l.b16 %v144
    %v180 = vunpack.c.l.b16 %v145
    %v181 = vunpack.c.l.b16 %v146
    %v182 = vunpack.c.l.b16 %v147
    %v183 = vunpack.c.l.b16 %v148
    %v184 = vunpack.c.l.b16 %v149
    %v185 = vunpack.c.l.b16 %v150
    %v186 = vunpack.c.l.b16 %v151
    %v187 = vunpack.c.l.b16 %v152
    %v188 = vunpack.c.l.b16 %v153
    %v189 = vunpack.c.l.b16 %v154
    %v190 = vunpack.c.l.b16 %v155
    %v191 = vunpack.c.l.b16 %v156
    %v192 = vunpack.c.l.b16 %v157
    %v193 = vunpack.c.l.b16 %v158
    %v194 = vunpack.c.l.b16 %v159
    %v195 = vpack.c.b16 %v180, %v179
    %v196 = vpack.c.b16 %v182, %v181
    %v197 = vpack.c.b16 %v184, %v183
    %v198 = vpack.c.b16 %v186, %v185
    %v199 = vpack.c.b16 %v188, %v187
    %v200 = vpack.c.b16 %v190, %v189
    %v201 = vpack.c.b16 %v192, %v191
    %v202 = vpack.c.b16 %v194, %v193
    %211 = vmatpush.bf16.msra.mxu0 %v202
    %212 = vmatpush.bf16.msra.mxu0 %v201
    %213 = vmatpush.bf16.msra.mxu0 %v200
    %214 = vmatpush.bf16.msra.mxu0 %v199
    %215 = vmatpush.bf16.msra.mxu0 %v198
    %216 = vmatpush.bf16.msra.mxu0 %v197
    %217 = vmatpush.bf16.msra.mxu0 %v196
    %218 = vmatpush.bf16.msra.mxu0 %v195
    %219 = vmatmul.bf16.gmra.mxu0 %v143
    %v220 = vpop.f32.mrf.mxu0
    %v221 = vadd.f32 %v162, %v220
    %v222 = vpop.f32.mrf.mxu0
    %v223 = vadd.f32 %v162, %v222
    %224 = vdwg.mxu0
    %v225 = vmax.f32 %v221, 0.0
    %v226 = vmax.f32 %v223, 0.0
    %227 = vst [vmem:[%s5] sm:$0xff] %v225
    %228 = vst [vmem:[%s5 + $0x8] sm:$0xff] %v226
    // Predicated region
    $region30: #{_resident_fwd.1} parent=1 // pred_check
      _
    $region31: #{_resident_fwd.1} parent=1 // pred_check_branch
      %230 = sbr.rel (0) target = $region33
    $region32: #{_resident_fwd.1} parent=1 // pred_region
      _
    $region33: #{_resident_fwd.1} parent=1 // pred_fallthru
      _
    // Predicated region
    $region34: #{_resident_fwd.1} parent=1 // pred_check
      _
    $region35: #{_resident_fwd.1} parent=1 // pred_check_branch
      %232 = sbr.rel (0) target = $region37
    $region36: #{_resident_fwd.1} parent=1 // pred_region
      _
    $region37: #{_resident_fwd.1} parent=1 // pred_fallthru
      _
    %233 = vsyncpa [#allocation3], 1
    %234 = vsyncpa [#allocation5], 1

</llo_original>
